<compile_context>
chip_gen: v7x
topology: tpu7x:2x2x1
jax: 0.10.0
libtpu: 0.0.40
codegen_flags: <defaults>
</compile_context>

<pallas_src>
import functools

import jax
import jax.numpy as jnp
from jax.experimental import pallas as pl
from jax.experimental.pallas import tpu as pltpu

BN_EPS = 1e-5
LANE = 128
SUBLANE = 8


def _round_up(x, m):
    return (x + m - 1) // m * m


def _conv_bn_relu_kernel(patches_ref, w_ref, gamma_ref, beta_ref, o_ref,
                         stats_ref, *, inv_m):
    """grid = (phase, m_tile).

    phase 0: matmul + accumulate per-channel [sum; sumsq] into stats_ref,
             fold into [scale; shift] on the last M tile.
    phase 1: matmul + y * scale + shift + ReLU per M tile.
    """
    phase = pl.program_id(0)
    m_idx = pl.program_id(1)
    num_m = pl.num_programs(1)

    # Conv as matmul on the MXU.  The conv bias is intentionally dropped:
    # train-mode BatchNorm subtracts the batch mean, which cancels it exactly.
    y = jnp.dot(patches_ref[...], w_ref[...], preferred_element_type=jnp.float32)

    @pl.when(phase == 0)
    def _stats_pass():
        @pl.when(m_idx == 0)
        def _init():
            stats_ref[...] = jnp.zeros_like(stats_ref)

        stats_ref[0:1, :] += jnp.sum(y, axis=0, keepdims=True)
        stats_ref[1:2, :] += jnp.sum(y * y, axis=0, keepdims=True)

        @pl.when(m_idx == num_m - 1)
        def _finalize():
            mean = stats_ref[0:1, :] * inv_m
            var = stats_ref[1:2, :] * inv_m - mean * mean       # biased variance
            scale = gamma_ref[...] * jax.lax.rsqrt(var + BN_EPS)
            shift = beta_ref[...] - mean * scale
            stats_ref[0:1, :] = scale
            stats_ref[1:2, :] = shift

    @pl.when(phase == 1)
    def _apply_pass():
        scale = stats_ref[0:1, :]
        shift = stats_ref[1:2, :]
        o_ref[...] = jnp.maximum(y * scale + shift, 0.0).astype(o_ref.dtype)


def _im2col_nhwc(x_nhwc, kh, kw, stride, padding):
    """x: (N, H, W, C) -> patches (N*Ho*Wo, kh*kw*C) with K order (kh, kw, c)."""
    n, h, w, c = x_nhwc.shape
    sh, sw = stride
    ph, pw = padding
    xp = jnp.pad(x_nhwc, ((0, 0), (ph, ph), (pw, pw), (0, 0)))
    ho = (h + 2 * ph - kh) // sh + 1
    wo = (w + 2 * pw - kw) // sw + 1
    cols = [xp[:, i:i + sh * ho:sh, j:j + sw * wo:sw, :]        # (N, Ho, Wo, C)
            for i in range(kh) for j in range(kw)]
    p = jnp.concatenate(cols, axis=-1)                          # (N, Ho, Wo, kh*kw*C)
    return p.reshape(n * ho * wo, kh * kw * c), ho, wo


@functools.partial(jax.jit,
                   static_argnames=("kernel", "stride", "padding", "tile_m"))
def conv_bn_relu_block(x, weight, bias, gamma, beta, *,
                       kernel, stride, padding, tile_m=512):
    """Forward pass of ConvBNReluBlock (train-mode BN).

    x:      (N, Cin, H, W) float32 (NCHW, PyTorch layout)
    weight: (Cout, Cin, KH, KW); bias/gamma/beta: (Cout,)
    returns (N, Cout, Ho, Wo) float32
    """
    del bias  # cancelled exactly by the batch-mean subtraction of train-mode BN
    kh, kw = kernel
    n, cin, _, _ = x.shape
    cout = weight.shape[0]

    # One cheap NCHW->NHWC transpose of x; patches are built already in the
    # (M, K) layout the kernel wants (no big transpose of the patch tensor).
    x_nhwc = jnp.transpose(x, (0, 2, 3, 1))
    patches, ho, wo = _im2col_nhwc(x_nhwc, kh, kw, stride, padding)   # (M, K)
    m_real, k = patches.shape

    # Lane-dense padding: K, Cout -> multiple of 128; M -> multiple of tile.
    k_pad = _round_up(k, LANE)
    c_pad = _round_up(cout, LANE)
    tm = min(tile_m, _round_up(m_real, SUBLANE))
    m_pad = _round_up(m_real, tm)
    num_m_tiles = m_pad // tm

    patches_p = jnp.pad(patches, ((0, m_pad - m_real), (0, k_pad - k)))
    # Weight K order must match the patches: (kh, kw, cin).
    w_mat = jnp.transpose(weight, (2, 3, 1, 0)).reshape(kh * kw * cin, cout)
    w_p = jnp.pad(w_mat, ((0, k_pad - k), (0, c_pad - cout)))
    gamma_p = jnp.pad(gamma, (0, c_pad - cout)).reshape(1, c_pad)
    beta_p = jnp.pad(beta, (0, c_pad - cout)).reshape(1, c_pad)

    kernel_fn = functools.partial(_conv_bn_relu_kernel, inv_m=1.0 / float(m_real))

    out_flat = pl.pallas_call(
        kernel_fn,
        out_shape=jax.ShapeDtypeStruct((m_pad, c_pad), jnp.float32),
        grid_spec=pltpu.PrefetchScalarGridSpec(
            num_scalar_prefetch=0,
            grid=(2, num_m_tiles),                                  # (phase, M tile)
            in_specs=[
                pl.BlockSpec((tm, k_pad), lambda p, i: (i, 0)),     # patches (pipelined)
                pl.BlockSpec((k_pad, c_pad), lambda p, i: (0, 0)),  # weights (resident)
                pl.BlockSpec((1, c_pad), lambda p, i: (0, 0)),      # gamma   (resident)
                pl.BlockSpec((1, c_pad), lambda p, i: (0, 0)),      # beta    (resident)
            ],
            # Phase 0 parks on block 0 (never flushed mid-phase); phase 1 walks
            # the M tiles and writes each block exactly once.
            out_specs=pl.BlockSpec((tm, c_pad), lambda p, i: (p * i, 0)),
            scratch_shapes=[pltpu.VMEM((2, c_pad), jnp.float32)],   # [sum;sumsq]->[scale;shift]
        ),
        compiler_params=pltpu.CompilerParams(
            # Both axes must stay sequential: the phase axis orders stats->apply
            # and the M axis accumulates into the shared VMEM stats scratch.
            dimension_semantics=("arbitrary", "arbitrary")),
    )(patches_p, w_p, gamma_p, beta_p)

    out = out_flat[:m_real, :cout].reshape(n, ho, wo, cout)
    return jnp.transpose(out, (0, 3, 1, 2))   # back to NCHW only at the module boundary


def _reference(x, weight, bias, gamma, beta, *, stride, padding):
    """Pure-JAX reference (lax conv + train-mode BN + ReLU) for validation."""
    y = jax.lax.conv_general_dilated(
        x, weight, window_strides=stride,
        padding=[(padding[0], padding[0]), (padding[1], padding[1])],
        dimension_numbers=("NCHW", "OIHW", "NCHW"))
    y = y + bias.reshape(1, -1, 1, 1)
    mean = jnp.mean(y, axis=(0, 2, 3), keepdims=True)
    var = jnp.mean((y - mean) ** 2, axis=(0, 2, 3), keepdims=True)
    y = (y - mean) * jax.lax.rsqrt(var + BN_EPS)
    y = y * gamma.reshape(1, -1, 1, 1) + beta.reshape(1, -1, 1, 1)
    return jnp.maximum(y, 0.0)


if __name__ == "__main__":
    # ConvBNReluBlock(in_channels=4, out_channels=8, kernel=(3,3), stride=(1,1), padding=(1,1))
    N, CIN, H, W = 2, 4, 16, 16
    COUT, KH, KW = 8, 3, 3
    STRIDE, PAD = (1, 1), (1, 1)

    key = jax.random.PRNGKey(0)
    kx, kw_, kb, kg, kbe = jax.random.split(key, 5)
    x = jax.random.normal(kx, (N, CIN, H, W), dtype=jnp.float32)
    weight = 0.1 * jax.random.normal(kw_, (COUT, CIN, KH, KW), dtype=jnp.float32)
    bias = 0.1 * jax.random.normal(kb, (COUT,), dtype=jnp.float32)
    gamma = 1.0 + 0.1 * jax.random.normal(kg, (COUT,), dtype=jnp.float32)
    beta = 0.1 * jax.random.normal(kbe, (COUT,), dtype=jnp.float32)

    # tile_m=256 so the demo (M = 2*16*16 = 512) exercises the multi-tile
    # two-pass statistics path (grid = (2, 2)).
    out = conv_bn_relu_block(x, weight, bias, gamma, beta,
                             kernel=(KH, KW), stride=STRIDE, padding=PAD,
                             tile_m=256)
    out = jax.block_until_ready(out)

    ref = _reference(x, weight, bias, gamma, beta, stride=STRIDE, padding=PAD)
    assert out.shape == (N, COUT, H, W)
    assert jnp.allclose(out, ref, atol=2e-4, rtol=2e-4)

    print("KERNEL_OK")
</pallas_src>

<mosaic_0001>
module attributes {stable_mosaic.version = 11 : i64} {
  func.func @_conv_bn_relu_kernel(%arg0: i32, %arg1: i32, %arg2: memref<256x128xf32, #tpu.memory_space<vmem>>, %arg3: memref<128x128xf32, #tpu.memory_space<vmem>>, %arg4: memref<1x128xf32, #tpu.memory_space<vmem>>, %arg5: memref<1x128xf32, #tpu.memory_space<vmem>>, %arg6: memref<256x128xf32, #tpu.memory_space<vmem>>, %arg7: memref<2x128xf32, #tpu.memory_space<vmem>>) attributes {dimension_semantics = [#tpu.dimension_semantics<arbitrary>, #tpu.dimension_semantics<arbitrary>], iteration_bounds = array<i64: 2, 2>, scalar_prefetch = 0 : i64, scratch_operands = 1 : i64, tpu.core_type = #tpu.core_type<tc>, window_params = [{transform_indices = @transform_0, window_bounds = array<i64: 256, 128>}, {pipeline_mode = #tpu.pipeline_mode<synchronous>, transform_indices = @transform_1, window_bounds = array<i64: 128, 128>}, {pipeline_mode = #tpu.pipeline_mode<synchronous>, transform_indices = @transform_2, window_bounds = array<i64: 1, 128>}, {pipeline_mode = #tpu.pipeline_mode<synchronous>, transform_indices = @transform_3, window_bounds = array<i64: 1, 128>}, {transform_indices = @transform_4, window_bounds = array<i64: 256, 128>}]} {
    %c0 = arith.constant 0 : index
    %c0_0 = arith.constant 0 : index
    %0 = vector.load %arg2[%c0, %c0_0] : memref<256x128xf32, #tpu.memory_space<vmem>>, vector<256x128xf32>
    %c0_1 = arith.constant 0 : index
    %c0_2 = arith.constant 0 : index
    %1 = vector.load %arg3[%c0_1, %c0_2] : memref<128x128xf32, #tpu.memory_space<vmem>>, vector<128x128xf32>
    %cst = arith.constant dense<0.000000e+00> : vector<256x128xf32>
    %2 = tpu.matmul %0, %1, %cst {dimension_numbers = #tpu.dot_dimension_numbers<[1], [0], [0], [1], [0, 0, 1, 1], [], []>} : vector<256x128xf32>, vector<128x128xf32>, vector<256x128xf32> -> vector<256x128xf32>
    %c0_i32 = arith.constant 0 : i32
    %3 = arith.cmpi eq, %arg0, %c0_i32 : i32
    %4 = arith.extui %3 : i1 to i32
    %c0_i32_3 = arith.constant 0 : i32
    %5 = arith.cmpi ne, %4, %c0_i32_3 : i32
    scf.if %5 {
      %c0_i32_5 = arith.constant 0 : i32
      %9 = arith.cmpi eq, %arg1, %c0_i32_5 : i32
      %10 = arith.extui %9 : i1 to i32
      %c0_i32_6 = arith.constant 0 : i32
      %11 = arith.cmpi ne, %10, %c0_i32_6 : i32
      scf.if %11 {
        %cst_18 = arith.constant 0.000000e+00 : f32
        %26 = vector.broadcast %cst_18 : f32 to vector<2x128xf32>
        %c0_19 = arith.constant 0 : index
        %c0_20 = arith.constant 0 : index
        %27 = vector.load %arg7[%c0_19, %c0_20] : memref<2x128xf32, #tpu.memory_space<vmem>>, vector<2x128xf32>
        tpu.vector_store %arg7[%c0_19, %c0_20], %26 {strides = array<i32>} : memref<2x128xf32, #tpu.memory_space<vmem>>, vector<2x128xf32>,
      } else {
      }
      %c0_7 = arith.constant 0 : index
      %c0_8 = arith.constant 0 : index
      %12 = vector.load %arg7[%c0_7, %c0_8] : memref<2x128xf32, #tpu.memory_space<vmem>>, vector<1x128xf32>
      %cst_9 = arith.constant dense<0.000000e+00> : vector<128xf32>
      %13 = vector.multi_reduction <add>, %2, %cst_9 [0] : vector<256x128xf32> to vector<128xf32>
      %14 = vector.shape_cast %13 : vector<128xf32> to vector<1x128xf32>
      %15 = arith.addf %12, %14 : vector<1x128xf32>
      %c0_10 = arith.constant 0 : index
      %c0_11 = arith.constant 0 : index
      %16 = vector.load %arg7[%c0_10, %c0_11] : memref<2x128xf32, #tpu.memory_space<vmem>>, vector<1x128xf32>
      tpu.vector_store %arg7[%c0_10, %c0_11], %15 {strides = array<i32>} : memref<2x128xf32, #tpu.memory_space<vmem>>, vector<1x128xf32>,
      %c1 = arith.constant 1 : index
      %c0_12 = arith.constant 0 : index
      %17 = vector.load %arg7[%c1, %c0_12] : memref<2x128xf32, #tpu.memory_space<vmem>>, vector<1x128xf32>
      %18 = arith.mulf %2, %2 : vector<256x128xf32>
      %cst_13 = arith.constant dense<0.000000e+00> : vector<128xf32>
      %19 = vector.multi_reduction <add>, %18, %cst_13 [0] : vector<256x128xf32> to vector<128xf32>
      %20 = vector.shape_cast %19 : vector<128xf32> to vector<1x128xf32>
      %21 = arith.addf %17, %20 : vector<1x128xf32>
      %c1_14 = arith.constant 1 : index
      %c0_15 = arith.constant 0 : index
      %22 = vector.load %arg7[%c1_14, %c0_15] : memref<2x128xf32, #tpu.memory_space<vmem>>, vector<1x128xf32>
      tpu.vector_store %arg7[%c1_14, %c0_15], %21 {strides = array<i32>} : memref<2x128xf32, #tpu.memory_space<vmem>>, vector<1x128xf32>,
      %c1_i32_16 = arith.constant 1 : i32
      %23 = arith.cmpi eq, %arg1, %c1_i32_16 : i32
      %24 = arith.extui %23 : i1 to i32
      %c0_i32_17 = arith.constant 0 : i32
      %25 = arith.cmpi ne, %24, %c0_i32_17 : i32
      scf.if %25 {
        %c0_18 = arith.constant 0 : index
        %c0_19 = arith.constant 0 : index
        %26 = vector.load %arg7[%c0_18, %c0_19] : memref<2x128xf32, #tpu.memory_space<vmem>>, vector<1x128xf32>
        %cst_20 = arith.constant 0.001953125 : f32
        %27 = vector.broadcast %cst_20 : f32 to vector<1x128xf32>
        %28 = arith.mulf %26, %27 : vector<1x128xf32>
        %c1_21 = arith.constant 1 : index
        %c0_22 = arith.constant 0 : index
        %29 = vector.load %arg7[%c1_21, %c0_22] : memref<2x128xf32, #tpu.memory_space<vmem>>, vector<1x128xf32>
        %cst_23 = arith.constant 0.001953125 : f32
        %30 = vector.broadcast %cst_23 : f32 to vector<1x128xf32>
        %31 = arith.mulf %29, %30 : vector<1x128xf32>
        %32 = arith.mulf %28, %28 : vector<1x128xf32>
        %33 = arith.subf %31, %32 : vector<1x128xf32>
        %c0_24 = arith.constant 0 : index
        %c0_25 = arith.constant 0 : index
        %34 = vector.load %arg4[%c0_24, %c0_25] : memref<1x128xf32, #tpu.memory_space<vmem>>, vector<1x128xf32>
        %cst_26 = arith.constant 9.99999974E-6 : f32
        %35 = vector.broadcast %cst_26 : f32 to vector<1x128xf32>
        %36 = arith.addf %33, %35 : vector<1x128xf32>
        %37 = math.rsqrt %36 : vector<1x128xf32>
        %38 = arith.mulf %34, %37 : vector<1x128xf32>
        %c0_27 = arith.constant 0 : index
        %c0_28 = arith.constant 0 : index
        %39 = vector.load %arg5[%c0_27, %c0_28] : memref<1x128xf32, #tpu.memory_space<vmem>>, vector<1x128xf32>
        %40 = arith.mulf %28, %38 : vector<1x128xf32>
        %41 = arith.subf %39, %40 : vector<1x128xf32>
        %c0_29 = arith.constant 0 : index
        %c0_30 = arith.constant 0 : index
        %42 = vector.load %arg7[%c0_29, %c0_30] : memref<2x128xf32, #tpu.memory_space<vmem>>, vector<1x128xf32>
        tpu.vector_store %arg7[%c0_29, %c0_30], %38 {strides = array<i32>} : memref<2x128xf32, #tpu.memory_space<vmem>>, vector<1x128xf32>,
        %c1_31 = arith.constant 1 : index
        %c0_32 = arith.constant 0 : index
        %43 = vector.load %arg7[%c1_31, %c0_32] : memref<2x128xf32, #tpu.memory_space<vmem>>, vector<1x128xf32>
        tpu.vector_store %arg7[%c1_31, %c0_32], %41 {strides = array<i32>} : memref<2x128xf32, #tpu.memory_space<vmem>>, vector<1x128xf32>,
      } else {
      }
    } else {
    }
    %c1_i32 = arith.constant 1 : i32
    %6 = arith.cmpi eq, %arg0, %c1_i32 : i32
    %7 = arith.extui %6 : i1 to i32
    %c0_i32_4 = arith.constant 0 : i32
    %8 = arith.cmpi ne, %7, %c0_i32_4 : i32
    scf.if %8 {
      %c0_5 = arith.constant 0 : index
      %c0_6 = arith.constant 0 : index
      %9 = vector.load %arg7[%c0_5, %c0_6] : memref<2x128xf32, #tpu.memory_space<vmem>>, vector<1x128xf32>
      %c1 = arith.constant 1 : index
      %c0_7 = arith.constant 0 : index
      %10 = vector.load %arg7[%c1, %c0_7] : memref<2x128xf32, #tpu.memory_space<vmem>>, vector<1x128xf32>
      %11 = vector.broadcast %9 : vector<1x128xf32> to vector<256x128xf32>
      %12 = arith.mulf %2, %11 : vector<256x128xf32>
      %13 = vector.broadcast %10 : vector<1x128xf32> to vector<256x128xf32>
      %14 = arith.addf %12, %13 : vector<256x128xf32>
      %cst_8 = arith.constant 0.000000e+00 : f32
      %15 = vector.broadcast %cst_8 : f32 to vector<256x128xf32>
      %16 = arith.maximumf %14, %15 : vector<256x128xf32>
      %c0_9 = arith.constant 0 : index
      %c0_10 = arith.constant 0 : index
      %17 = vector.load %arg6[%c0_9, %c0_10] : memref<256x128xf32, #tpu.memory_space<vmem>>, vector<256x128xf32>
      tpu.vector_store %arg6[%c0_9, %c0_10], %16 {strides = array<i32>} : memref<256x128xf32, #tpu.memory_space<vmem>>, vector<256x128xf32>,
    } else {
    }
    return
  }
  func.func @transform_0(%arg0: i32, %arg1: i32) -> (i32, i32) {
    %c0_i32 = arith.constant 0 : i32
    %c0_i32_0 = arith.constant 0 : i32
    return %arg1, %c0_i32 : i32, i32
  }
  func.func @transform_1(%arg0: i32, %arg1: i32) -> (i32, i32) {
    %c0_i32 = arith.constant 0 : i32
    %c0_i32_0 = arith.constant 0 : i32
    %c0_i32_1 = arith.constant 0 : i32
    return %c0_i32, %c0_i32_0 : i32, i32
  }
  func.func @transform_2(%arg0: i32, %arg1: i32) -> (i32, i32) {
    %c0_i32 = arith.constant 0 : i32
    %c0_i32_0 = arith.constant 0 : i32
    %c0_i32_1 = arith.constant 0 : i32
    return %c0_i32, %c0_i32_0 : i32, i32
  }
  func.func @transform_3(%arg0: i32, %arg1: i32) -> (i32, i32) {
    %c0_i32 = arith.constant 0 : i32
    %c0_i32_0 = arith.constant 0 : i32
    %c0_i32_1 = arith.constant 0 : i32
    return %c0_i32, %c0_i32_0 : i32, i32
  }
  func.func @transform_4(%arg0: i32, %arg1: i32) -> (i32, i32) {
    %0 = arith.muli %arg0, %arg1 : i32
    %c0_i32 = arith.constant 0 : i32
    %c0_i32_0 = arith.constant 0 : i32
    return %0, %c0_i32 : i32, i32
  }
}

</mosaic_0001>

<llo_original>
// kernel: conv_bn_relu_block.1
$region0: #{conv_bn_relu_block.1}
  #allocation0 [shape = 'u32[]', space=smem, size = 0x4, offset = 0x4, fixed_abs, tag = 'smem constant byte address 0x4 - core index']
  #allocation1 [shape = 'u32[144,128]{1,0:T(1,128)}', space=vmem, size = 0x12000, scoped, tag = 'internal scratch']
  #allocation2 [shape = 'f32[2,128]{1,0:T(2,128)}', space=vmem, size = 0x400, scoped, tag = 'scratch operand']
  %s0 = inlined_call_operand.vmem [shape: f32[512,128], index: 0, kind: input, shape index: {}]
  %s1 = inlined_call_operand.vmem [shape: f32[128,128], index: 1, kind: input, shape index: {}]
  %s2 = inlined_call_operand.vmem [shape: f32[1,128], index: 2, kind: input, shape index: {}]
  %s3 = inlined_call_operand.vmem [shape: f32[1,128], index: 3, kind: input, shape index: {}]
  %s4 = inlined_call_operand.vmem [shape: f32[512,128], index: 4, kind: output, shape index: {}]
  %s5 = sld [smem:[#allocation0]]
  $region65: #{conv_bn_relu_block.1} parent=0
    _
  %s7 = ssub.s32 1, %s5
  %s8 = scalar_select 0, %s7, %s5
  loop: start=0, step=1, limit=6
  $region2: #{conv_bn_relu_block.1} parent=0 // loop_pre_header
    _
  $region3: #{conv_bn_relu_block.1} parent=0 // loop_header
    %s10 = sphi 0, %s14
    %p11 = scmp.ge.s32.totalorder %s10, 6
    %s17 = sphi 0, %s29
    %s18 = sphi 0, %s25
    %s19 = sphi 0, %s17
    %s20 = sphi 0, %s18
    %s21 = sphi 0, %s19
    %s22 = sphi 0, %s20
    %s32 = sphi 0, %s34
    %s35 = sphi 0, %s32
    %s36 = sphi 0, %s35
    %s52 = sphi 0, %s36
    %s56 = sphi 0, %s56
    %s58 = sphi 0, %s56
    %s59 = sphi 0, %s58
    %s73 = sphi 0, %s59
    %s77 = sphi 0, %s77
    %s79 = sphi 0, %s77
    %s80 = sphi 0, %s79
    %s94 = sphi 0, %s80
    %s98 = sphi 0, %s98
    %s100 = sphi 0, %s98
    %s101 = sphi 0, %s100
    %s115 = sphi 0, %s101
    %s123 = sphi 0, %s125
    %s126 = sphi 0, %s123
    %s127 = sphi 0, %s126
    %s143 = sphi 0, %s127
  $region4: #{conv_bn_relu_block.1} parent=0 // loop_header_branch
    %13 = sbr.rel (%p11) target = $region8
  $region5: #{conv_bn_relu_block.1} parent=0 // loop_body
    %s15 = ssub.s32 %s10, 1
    %s16 = ssub.s32 %s10, 2
    %s23 = sadd.s32 1, %s18
    %p24 = scmp.ge.s32.totalorder %s23, 2
    %s25 = scalar_select %p24, 0, %s23
    %s26 = sadd.s32 1, %s17
    %s27 = scalar_select %p24, %s26, %s17
    %p28 = scmp.ge.s32.totalorder %s27, 2
    %s29 = scalar_select %p28, 0, %s27
    %s30 = ssub.s32 %s18, %s25
    %p31 = scmp.eq.s32.totalorder %s30, 0
    %s33 = sadd.s32 %s32, 1
    %s34 = scalar_select %p31, %s32, %s33
    %p37 = pneg %p31
    %p38 = scmp.eq.s32.totalorder %s10, 3
    %p39 = por %p37, %p38
    %p40 = scmp.ne.s32.totalorder %s32, %s35
    %p41 = scmp.eq.s32.totalorder %s10, 0
    %p42 = por %p40, %p41
    %p43 = scmp.ne.s32.totalorder %s32, %s35
    %p44 = scmp.eq.s32.totalorder %s15, 3
    %p45 = por %p43, %p44
    %p46 = scmp.ne.s32.totalorder %s35, %s36
    %p47 = scmp.eq.s32.totalorder %s15, 0
    %p48 = por %p46, %p47
    %p49 = scmp.ne.s32.totalorder %s35, %s36
    %p50 = scmp.eq.s32.totalorder %s16, 3
    %p51 = por %p49, %p50
    %p53 = scmp.ne.s32.totalorder %s36, %s52
    %p54 = scmp.eq.s32.totalorder %s16, 0
    %p55 = por %p53, %p54
    %s57 = sadd.s32 %s56, 1
    %p60 = scmp.eq.s32.totalorder %s10, 3
    %p61 = scmp.ne.s32.totalorder %s56, %s58
    %p62 = scmp.eq.s32.totalorder %s10, 0
    %p63 = por %p61, %p62
    %p64 = scmp.ne.s32.totalorder %s56, %s58
    %p65 = scmp.eq.s32.totalorder %s15, 3
    %p66 = por %p64, %p65
    %p67 = scmp.ne.s32.totalorder %s58, %s59
    %p68 = scmp.eq.s32.totalorder %s15, 0
    %p69 = por %p67, %p68
    %p70 = scmp.ne.s32.totalorder %s58, %s59
    %p71 = scmp.eq.s32.totalorder %s16, 3
    %p72 = por %p70, %p71
    %p74 = scmp.ne.s32.totalorder %s59, %s73
    %p75 = scmp.eq.s32.totalorder %s16, 0
    %p76 = por %p74, %p75
    %s78 = sadd.s32 %s77, 1
    %p81 = scmp.eq.s32.totalorder %s10, 3
    %p82 = scmp.ne.s32.totalorder %s77, %s79
    %p83 = scmp.eq.s32.totalorder %s10, 0
    %p84 = por %p82, %p83
    %p85 = scmp.ne.s32.totalorder %s77, %s79
    %p86 = scmp.eq.s32.totalorder %s15, 3
    %p87 = por %p85, %p86
    %p88 = scmp.ne.s32.totalorder %s79, %s80
    %p89 = scmp.eq.s32.totalorder %s15, 0
    %p90 = por %p88, %p89
    %p91 = scmp.ne.s32.totalorder %s79, %s80
    %p92 = scmp.eq.s32.totalorder %s16, 3
    %p93 = por %p91, %p92
    %p95 = scmp.ne.s32.totalorder %s80, %s94
    %p96 = scmp.eq.s32.totalorder %s16, 0
    %p97 = por %p95, %p96
    %s99 = sadd.s32 %s98, 1
    %p102 = scmp.eq.s32.totalorder %s10, 3
    %p103 = scmp.ne.s32.totalorder %s98, %s100
    %p104 = scmp.eq.s32.totalorder %s10, 0
    %p105 = por %p103, %p104
    %p106 = scmp.ne.s32.totalorder %s98, %s100
    %p107 = scmp.eq.s32.totalorder %s15, 3
    %p108 = por %p106, %p107
    %p109 = scmp.ne.s32.totalorder %s100, %s101
    %p110 = scmp.eq.s32.totalorder %s15, 0
    %p111 = por %p109, %p110
    %p112 = scmp.ne.s32.totalorder %s100, %s101
    %p113 = scmp.eq.s32.totalorder %s16, 3
    %p114 = por %p112, %p113
    %p116 = scmp.ne.s32.totalorder %s101, %s115
    %p117 = scmp.eq.s32.totalorder %s16, 0
    %p118 = por %p116, %p117
    %s119 = smul.u32 %s17, %s18
    %s120 = smul.u32 %s29, %s25
    %s121 = ssub.s32 %s119, %s120
    %p122 = scmp.eq.s32.totalorder %s121, 0
    %s124 = sadd.s32 %s123, 1
    %s125 = scalar_select %p122, %s123, %s124
    %p128 = pneg %p122
    %p129 = scmp.eq.s32.totalorder %s10, 3
    %p130 = por %p128, %p129
    %p131 = scmp.ne.s32.totalorder %s123, %s126
    %p132 = scmp.eq.s32.totalorder %s10, 0
    %p133 = por %p131, %p132
    %p134 = scmp.ne.s32.totalorder %s123, %s126
    %p135 = scmp.eq.s32.totalorder %s15, 3
    %p136 = por %p134, %p135
    %p137 = scmp.ne.s32.totalorder %s126, %s127
    %p138 = scmp.eq.s32.totalorder %s15, 0
    %p139 = por %p137, %p138
    %p140 = scmp.ne.s32.totalorder %s126, %s127
    %p141 = scmp.eq.s32.totalorder %s16, 3
    %p142 = por %p140, %p141
    %p144 = scmp.ne.s32.totalorder %s127, %s143
    %p145 = scmp.eq.s32.totalorder %s16, 0
    %p146 = por %p144, %p145
    %p147 = scmp.le.s32.totalorder 1, %s10
    %p148 = scmp.lt.s32.totalorder %s10, 5
    %p149 = pnand %p147, %p148
    %p150 = pneg %p149
    // Predicated region
    $region9: #{conv_bn_relu_block.1} parent=5 // pred_check
      _
    $region10: #{conv_bn_relu_block.1} parent=5 // pred_check_branch
      %152 = sbr.rel (%p149) target = $region12
    $region11: #{conv_bn_relu_block.1} parent=5 // pred_region
      %s153 = ssub.s32 %s10, 1
      // Predicated region
      $region13: #{conv_bn_relu_block.1} parent=11 // pred_check
        %p154 = pneg %p69
      $region14: #{conv_bn_relu_block.1} parent=11 // pred_check_branch
        %156 = sbr.rel (%p154) target = $region16
      $region15: #{conv_bn_relu_block.1} parent=11 // pred_region
        _
      $region16: #{conv_bn_relu_block.1} parent=11 // pred_fallthru
        _
      // Predicated region
      $region17: #{conv_bn_relu_block.1} parent=11 // pred_check
        %p157 = pneg %p90
      $region18: #{conv_bn_relu_block.1} parent=11 // pred_check_branch
        %159 = sbr.rel (%p157) target = $region20
      $region19: #{conv_bn_relu_block.1} parent=11 // pred_region
        _
      $region20: #{conv_bn_relu_block.1} parent=11 // pred_fallthru
        _
      // Predicated region
      $region21: #{conv_bn_relu_block.1} parent=11 // pred_check
        %p160 = pneg %p111
      $region22: #{conv_bn_relu_block.1} parent=11 // pred_check_branch
        %162 = sbr.rel (%p160) target = $region24
      $region23: #{conv_bn_relu_block.1} parent=11 // pred_region
        _
      $region24: #{conv_bn_relu_block.1} parent=11 // pred_fallthru
        _
    $region12: #{conv_bn_relu_block.1} parent=5 // pred_fallthru
      _
    %p163 = scmp.lt.s32.totalorder %s10, 4
    // Predicated region
    $region25: #{conv_bn_relu_block.1} parent=5 // pred_check
      %p164 = pneg %p163
    $region26: #{conv_bn_relu_block.1} parent=5 // pred_check_branch
      %166 = sbr.rel (%p164) target = $region28
    $region27: #{conv_bn_relu_block.1} parent=5 // pred_region
      // Predicated region
      $region29: #{conv_bn_relu_block.1} parent=27 // pred_check
        %p167 = pneg %p42
      $region30: #{conv_bn_relu_block.1} parent=27 // pred_check_branch
        %169 = sbr.rel (%p167) target = $region32
      $region31: #{conv_bn_relu_block.1} parent=27 // pred_region
        %s170 = smul.u32 32, %s18
        %p171 = scmp.lt.s32.totalorder %s170, 63
        %s172 = scalar_select %p171, %s170, 63
        %s173 = smul.addr %s172, 8
        %s174 = scalar_lea.vmem %s0, %s173
        %s175 = smul.u32 32, %s18
      $region32: #{conv_bn_relu_block.1} parent=27 // pred_fallthru
        _
    $region28: #{conv_bn_relu_block.1} parent=5 // pred_fallthru
      _
    %p176 = scmp.le.s32.totalorder 1, %s10
    %p177 = scmp.lt.s32.totalorder %s10, 5
    %p178 = pnand %p176, %p177
    %p179 = pneg %p178
    // Predicated region
    $region33: #{conv_bn_relu_block.1} parent=5 // pred_check
      _
    $region34: #{conv_bn_relu_block.1} parent=5 // pred_check_branch
      %181 = sbr.rel (%p178) target = $region36
    $region35: #{conv_bn_relu_block.1} parent=5 // pred_region
      %s182 = ssub.s32 %s10, 1
      %s183 = smul.u32 32, %s20
      %p184 = scmp.lt.s32.totalorder %s183, 63
      %s185 = scalar_select %p184, %s183, 63
      %s186 = smul.addr %s185, 8
      %s187 = scalar_lea.vmem %s0, %s186
      %p188 = pneg %p48
      %p189 = pneg %p45
      %p190 = pneg %p69
      %p191 = pneg %p66
      %p192 = pneg %p90
      %p193 = pneg %p87
      %p194 = pneg %p111
      %p195 = pneg %p108
      %p196 = pneg %p139
      %p197 = pneg %p136
      %s198 = smul.u32 %s19, %s20
      %s199 = smul.u32 32, %s198
      %p200 = scmp.lt.s32.totalorder %s199, 63
      %s201 = scalar_select %p200, %s199, 63
      %s202 = smul.addr %s201, 8
      %s203 = scalar_lea.vmem %s4, %s202
      %s204 = smul.u32 32, %s20
      %p205 = scmp.lt.s32.totalorder %s204, 63
      %s206 = scalar_select %p205, %s204, 63
      %s207 = smul.addr %s206, 8
      %s208 = scalar_lea.vmem %s0, %s207
      %s209 = smul.u32 32, %s20
      %s210 = smul.u32 %s19, %s20
      %s211 = smul.u32 32, %s210
      %p212 = scmp.lt.s32.totalorder %s211, 63
      %s213 = scalar_select %p212, %s211, 63
      %s214 = smul.addr %s213, 8
      %s215 = scalar_lea.vmem %s4, %s214
      %s216 = smul.u32 %s19, %s20
      %s217 = smul.u32 32, %s216
      %v218 = vld [vmem:[%s208] sm:$0xff]
      %v219 = vld [vmem:[%s208 + $0x8] sm:$0xff]
      %v220 = vld [vmem:[%s208 + $0x10] sm:$0xff]
      %v221 = vld [vmem:[%s208 + $0x18] sm:$0xff]
      %v222 = vld [vmem:[%s208 + $0x20] sm:$0xff]
      %v223 = vld [vmem:[%s208 + $0x28] sm:$0xff]
      %v224 = vld [vmem:[%s208 + $0x30] sm:$0xff]
      %v225 = vld [vmem:[%s208 + $0x38] sm:$0xff]
      %v226 = vld [vmem:[%s208 + $0x40] sm:$0xff]
      %v227 = vld [vmem:[%s208 + $0x48] sm:$0xff]
      %v228 = vld [vmem:[%s208 + $0x50] sm:$0xff]
      %v229 = vld [vmem:[%s208 + $0x58] sm:$0xff]
      %v230 = vld [vmem:[%s208 + $0x60] sm:$0xff]
      %v231 = vld [vmem:[%s208 + $0x68] sm:$0xff]
      %v232 = vld [vmem:[%s208 + $0x70] sm:$0xff]
      %v233 = vld [vmem:[%s208 + $0x78] sm:$0xff]
      %v234 = vld [vmem:[%s208 + $0x80] sm:$0xff]
      %v235 = vld [vmem:[%s208 + $0x88] sm:$0xff]
      %v236 = vld [vmem:[%s208 + $0x90] sm:$0xff]
      %v237 = vld [vmem:[%s208 + $0x98] sm:$0xff]
      %v238 = vld [vmem:[%s208 + $0xa0] sm:$0xff]
      %v239 = vld [vmem:[%s208 + $0xa8] sm:$0xff]
      %v240 = vld [vmem:[%s208 + $0xb0] sm:$0xff]
      %v241 = vld [vmem:[%s208 + $0xb8] sm:$0xff]
      %v242 = vld [vmem:[%s208 + $0xc0] sm:$0xff]
      %v243 = vld [vmem:[%s208 + $0xc8] sm:$0xff]
      %v244 = vld [vmem:[%s208 + $0xd0] sm:$0xff]
      %v245 = vld [vmem:[%s208 + $0xd8] sm:$0xff]
      %v246 = vld [vmem:[%s208 + $0xe0] sm:$0xff]
      %v247 = vld [vmem:[%s208 + $0xe8] sm:$0xff]
      %v248 = vld [vmem:[%s208 + $0xf0] sm:$0xff]
      %v249 = vld [vmem:[%s208 + $0xf8] sm:$0xff]
      %v250 = vld [vmem:[%s1] sm:$0xff]
      %v251 = vld [vmem:[%s1 + $0x8] sm:$0xff]
      %v252 = vld [vmem:[%s1 + $0x10] sm:$0xff]
      %v253 = vld [vmem:[%s1 + $0x18] sm:$0xff]
      %v254 = vld [vmem:[%s1 + $0x20] sm:$0xff]
      %v255 = vld [vmem:[%s1 + $0x28] sm:$0xff]
      %v256 = vld [vmem:[%s1 + $0x30] sm:$0xff]
      %v257 = vld [vmem:[%s1 + $0x38] sm:$0xff]
      %v258 = vld [vmem:[%s1 + $0x40] sm:$0xff]
      %v259 = vld [vmem:[%s1 + $0x48] sm:$0xff]
      %v260 = vld [vmem:[%s1 + $0x50] sm:$0xff]
      %v261 = vld [vmem:[%s1 + $0x58] sm:$0xff]
      %v262 = vld [vmem:[%s1 + $0x60] sm:$0xff]
      %v263 = vld [vmem:[%s1 + $0x68] sm:$0xff]
      %v264 = vld [vmem:[%s1 + $0x70] sm:$0xff]
      %v265 = vld [vmem:[%s1 + $0x78] sm:$0xff]
      %266 = vmatprep.subr.mxu0 0.0
      %267 = vmatpush1.msra.mxu0 %v250
      %268 = vmatprep.subr.mxu0 0.0
      %269 = vmatpush1.msra.mxu0 %v251
      %270 = vmatprep.subr.mxu0 0.0
      %271 = vmatpush1.msra.mxu0 %v252
      %272 = vmatprep.subr.mxu0 0.0
      %273 = vmatpush1.msra.mxu0 %v253
      %274 = vmatprep.subr.mxu0 0.0
      %275 = vmatpush1.msra.mxu0 %v254
      %276 = vmatprep.subr.mxu0 0.0
      %277 = vmatpush1.msra.mxu0 %v255
      %278 = vmatprep.subr.mxu0 0.0
      %279 = vmatpush1.msra.mxu0 %v256
      %280 = vmatprep.subr.mxu0 0.0
      %281 = vmatpush1.msra.mxu0 %v257
      %282 = vmatprep.subr.mxu0 0.0
      %283 = vmatpush1.msra.mxu0 %v258
      %284 = vmatprep.subr.mxu0 0.0
      %285 = vmatpush1.msra.mxu0 %v259
      %286 = vmatprep.subr.mxu0 0.0
      %287 = vmatpush1.msra.mxu0 %v260
      %288 = vmatprep.subr.mxu0 0.0
      %289 = vmatpush1.msra.mxu0 %v261
      %290 = vmatprep.subr.mxu0 0.0
      %291 = vmatpush1.msra.mxu0 %v262
      %292 = vmatprep.subr.mxu0 0.0
      %293 = vmatpush1.msra.mxu0 %v263
      %294 = vmatprep.subr.mxu0 0.0
      %295 = vmatpush1.msra.mxu0 %v264
      %296 = vmatprep.subr.mxu0 0.0
      %297 = vmatpush1.msra.mxu0 %v265
      %298 = vmatprep.subr.mxu0 0.0
      %299 = vmatpush1.msra.mxu0 0.0
      %300 = vmatprep.subr.mxu0 0.0
      %301 = vmatpush1.msra.mxu0 0.0
      %302 = vmatprep.subr.mxu0 0.0
      %303 = vmatpush1.msra.mxu0 0.0
      %304 = vmatprep.subr.mxu0 0.0
      %305 = vmatpush1.msra.mxu0 0.0
      %306 = vmatprep.subr.mxu0 0.0
      %307 = vmatpush1.msra.mxu0 0.0
      %308 = vmatprep.subr.mxu0 0.0
      %309 = vmatpush1.msra.mxu0 0.0
      %310 = vmatprep.subr.mxu0 0.0
      %311 = vmatpush1.msra.mxu0 0.0
      %312 = vmatprep.subr.mxu0 0.0
      %313 = vmatpush1.msra.mxu0 0.0
      %314 = vmatprep.subr.mxu0 0.0
      %315 = vmatpush1.msra.mxu0 0.0
      %316 = vmatprep.subr.mxu0 0.0
      %317 = vmatpush1.msra.mxu0 0.0
      %318 = vmatprep.subr.mxu0 0.0
      %319 = vmatpush1.msra.mxu0 0.0
      %320 = vmatprep.subr.mxu0 0.0
      %321 = vmatpush1.msra.mxu0 0.0
      %322 = vmatprep.subr.mxu0 0.0
      %323 = vmatpush1.msra.mxu0 0.0
      %324 = vmatprep.subr.mxu0 0.0
      %325 = vmatpush1.msra.mxu0 0.0
      %326 = vmatprep.subr.mxu0 0.0
      %327 = vmatpush1.msra.mxu0 0.0
      %328 = vmatprep.subr.mxu0 0.0
      %329 = vmatpush1.msra.mxu0 0.0
      %330 = vmatprep.mubr.f32.mxu0 0.0
      %331 = vmatmul.mubr.f32.gmra.mrb[0].mxu0 %v218
      %v332 = vpop.f32.mrb[0].mxu0
      %v333 = vadd.f32 0.0, %v332
      %v334 = vpop.f32.mrb[0].mxu0
      %335 = vmatprep.mubr.f32.mxu0 0.0
      %336 = vmatmul.mubr.f32.gmra.mrb[0].mxu0 %v219
      %v337 = vpop.f32.mrb[0].mxu0
      %v338 = vadd.f32 0.0, %v337
      %v339 = vpop.f32.mrb[0].mxu0
      %340 = vmatprep.mubr.f32.mxu0 0.0
      %341 = vmatmul.mubr.f32.gmra.mrb[0].mxu0 %v220
      %v342 = vpop.f32.mrb[0].mxu0
      %v343 = vadd.f32 0.0, %v342
      %v344 = vpop.f32.mrb[0].mxu0
      %345 = vmatprep.mubr.f32.mxu0 0.0
      %346 = vmatmul.mubr.f32.gmra.mrb[0].mxu0 %v221
      %v347 = vpop.f32.mrb[0].mxu0
      %v348 = vadd.f32 0.0, %v347
      %v349 = vpop.f32.mrb[0].mxu0
      %350 = vmatprep.mubr.f32.mxu0 0.0
      %351 = vmatmul.mubr.f32.gmra.mrb[0].mxu0 %v222
      %v352 = vpop.f32.mrb[0].mxu0
      %v353 = vadd.f32 0.0, %v352
      %v354 = vpop.f32.mrb[0].mxu0
      %355 = vmatprep.mubr.f32.mxu0 0.0
      %356 = vmatmul.mubr.f32.gmra.mrb[0].mxu0 %v223
      %v357 = vpop.f32.mrb[0].mxu0
      %v358 = vadd.f32 0.0, %v357
      %v359 = vpop.f32.mrb[0].mxu0
      %360 = vmatprep.mubr.f32.mxu0 0.0
      %361 = vmatmul.mubr.f32.gmra.mrb[0].mxu0 %v224
      %v362 = vpop.f32.mrb[0].mxu0
      %v363 = vadd.f32 0.0, %v362
      %v364 = vpop.f32.mrb[0].mxu0
      %365 = vmatprep.mubr.f32.mxu0 0.0
      %366 = vmatmul.mubr.f32.gmra.mrb[0].mxu0 %v225
      %v367 = vpop.f32.mrb[0].mxu0
      %v368 = vadd.f32 0.0, %v367
      %v369 = vpop.f32.mrb[0].mxu0
      %370 = vmatprep.mubr.f32.mxu0 0.0
      %371 = vmatmul.mubr.f32.gmra.mrb[0].mxu0 %v226
      %v372 = vpop.f32.mrb[0].mxu0
      %v373 = vadd.f32 0.0, %v372
      %v374 = vpop.f32.mrb[0].mxu0
      %375 = vmatprep.mubr.f32.mxu0 0.0
      %376 = vmatmul.mubr.f32.gmra.mrb[0].mxu0 %v227
      %v377 = vpop.f32.mrb[0].mxu0
      %v378 = vadd.f32 0.0, %v377
      %v379 = vpop.f32.mrb[0].mxu0
      %380 = vmatprep.mubr.f32.mxu0 0.0
      %381 = vmatmul.mubr.f32.gmra.mrb[0].mxu0 %v228
      %v382 = vpop.f32.mrb[0].mxu0
      %v383 = vadd.f32 0.0, %v382
      %v384 = vpop.f32.mrb[0].mxu0
      %385 = vmatprep.mubr.f32.mxu0 0.0
      %386 = vmatmul.mubr.f32.gmra.mrb[0].mxu0 %v229
      %v387 = vpop.f32.mrb[0].mxu0
      %v388 = vadd.f32 0.0, %v387
      %v389 = vpop.f32.mrb[0].mxu0
      %390 = vmatprep.mubr.f32.mxu0 0.0
      %391 = vmatmul.mubr.f32.gmra.mrb[0].mxu0 %v230
      %v392 = vpop.f32.mrb[0].mxu0
      %v393 = vadd.f32 0.0, %v392
      %v394 = vpop.f32.mrb[0].mxu0
      %395 = vmatprep.mubr.f32.mxu0 0.0
      %396 = vmatmul.mubr.f32.gmra.mrb[0].mxu0 %v231
      %v397 = vpop.f32.mrb[0].mxu0
      %v398 = vadd.f32 0.0, %v397
      %v399 = vpop.f32.mrb[0].mxu0
      %400 = vmatprep.mubr.f32.mxu0 0.0
      %401 = vmatmul.mubr.f32.gmra.mrb[0].mxu0 %v232
      %v402 = vpop.f32.mrb[0].mxu0
      %v403 = vadd.f32 0.0, %v402
      %v404 = vpop.f32.mrb[0].mxu0
      %405 = vmatprep.mubr.f32.mxu0 0.0
      %406 = vmatmul.mubr.f32.gmra.mrb[0].mxu0 %v233
      %v407 = vpop.f32.mrb[0].mxu0
      %v408 = vadd.f32 0.0, %v407
      %v409 = vpop.f32.mrb[0].mxu0
      %410 = vmatprep.mubr.f32.mxu0 0.0
      %411 = vmatmul.mubr.f32.gmra.mrb[0].mxu0 %v234
      %v412 = vpop.f32.mrb[0].mxu0
      %v413 = vadd.f32 0.0, %v412
      %v414 = vpop.f32.mrb[0].mxu0
      %415 = vmatprep.mubr.f32.mxu0 0.0
      %416 = vmatmul.mubr.f32.gmra.mrb[0].mxu0 %v235
      %v417 = vpop.f32.mrb[0].mxu0
      %v418 = vadd.f32 0.0, %v417
      %v419 = vpop.f32.mrb[0].mxu0
      %420 = vmatprep.mubr.f32.mxu0 0.0
      %421 = vmatmul.mubr.f32.gmra.mrb[0].mxu0 %v236
      %v422 = vpop.f32.mrb[0].mxu0
      %v423 = vadd.f32 0.0, %v422
      %v424 = vpop.f32.mrb[0].mxu0
      %425 = vmatprep.mubr.f32.mxu0 0.0
      %426 = vmatmul.mubr.f32.gmra.mrb[0].mxu0 %v237
      %v427 = vpop.f32.mrb[0].mxu0
      %v428 = vadd.f32 0.0, %v427
      %v429 = vpop.f32.mrb[0].mxu0
      %430 = vmatprep.mubr.f32.mxu0 0.0
      %431 = vmatmul.mubr.f32.gmra.mrb[0].mxu0 %v238
      %v432 = vpop.f32.mrb[0].mxu0
      %v433 = vadd.f32 0.0, %v432
      %v434 = vpop.f32.mrb[0].mxu0
      %435 = vmatprep.mubr.f32.mxu0 0.0
      %436 = vmatmul.mubr.f32.gmra.mrb[0].mxu0 %v239
      %v437 = vpop.f32.mrb[0].mxu0
      %v438 = vadd.f32 0.0, %v437
      %v439 = vpop.f32.mrb[0].mxu0
      %440 = vmatprep.mubr.f32.mxu0 0.0
      %441 = vmatmul.mubr.f32.gmra.mrb[0].mxu0 %v240
      %v442 = vpop.f32.mrb[0].mxu0
      %v443 = vadd.f32 0.0, %v442
      %v444 = vpop.f32.mrb[0].mxu0
      %445 = vmatprep.mubr.f32.mxu0 0.0
      %446 = vmatmul.mubr.f32.gmra.mrb[0].mxu0 %v241
      %v447 = vpop.f32.mrb[0].mxu0
      %v448 = vadd.f32 0.0, %v447
      %v449 = vpop.f32.mrb[0].mxu0
      %450 = vmatprep.mubr.f32.mxu0 0.0
      %451 = vmatmul.mubr.f32.gmra.mrb[0].mxu0 %v242
      %v452 = vpop.f32.mrb[0].mxu0
      %v453 = vadd.f32 0.0, %v452
      %v454 = vpop.f32.mrb[0].mxu0
      %455 = vmatprep.mubr.f32.mxu0 0.0
      %456 = vmatmul.mubr.f32.gmra.mrb[0].mxu0 %v243
      %v457 = vpop.f32.mrb[0].mxu0
      %v458 = vadd.f32 0.0, %v457
      %v459 = vpop.f32.mrb[0].mxu0
      %460 = vmatprep.mubr.f32.mxu0 0.0
      %461 = vmatmul.mubr.f32.gmra.mrb[0].mxu0 %v244
      %v462 = vpop.f32.mrb[0].mxu0
      %v463 = vadd.f32 0.0, %v462
      %v464 = vpop.f32.mrb[0].mxu0
      %465 = vmatprep.mubr.f32.mxu0 0.0
      %466 = vmatmul.mubr.f32.gmra.mrb[0].mxu0 %v245
      %v467 = vpop.f32.mrb[0].mxu0
      %v468 = vadd.f32 0.0, %v467
      %v469 = vpop.f32.mrb[0].mxu0
      %470 = vmatprep.mubr.f32.mxu0 0.0
      %471 = vmatmul.mubr.f32.gmra.mrb[0].mxu0 %v246
      %v472 = vpop.f32.mrb[0].mxu0
      %v473 = vadd.f32 0.0, %v472
      %v474 = vpop.f32.mrb[0].mxu0
      %475 = vmatprep.mubr.f32.mxu0 0.0
      %476 = vmatmul.mubr.f32.gmra.mrb[0].mxu0 %v247
      %v477 = vpop.f32.mrb[0].mxu0
      %v478 = vadd.f32 0.0, %v477
      %v479 = vpop.f32.mrb[0].mxu0
      %480 = vmatprep.mubr.f32.mxu0 0.0
      %481 = vmatmul.mubr.f32.gmra.mrb[0].mxu0 %v248
      %v482 = vpop.f32.mrb[0].mxu0
      %v483 = vadd.f32 0.0, %v482
      %v484 = vpop.f32.mrb[0].mxu0
      %485 = vmatprep.mubr.f32.mxu0 0.0
      %486 = vmatmul.mubr.f32.gmra.mrb[0].mxu0 %v249
      %v487 = vpop.f32.mrb[0].mxu0
      %v488 = vadd.f32 0.0, %v487
      %v489 = vpop.f32.mrb[0].mxu0
      %490 = vdwg.mxu0
      %p491 = scmp.eq.s32.totalorder %s19, 0
      // Predicated region
      $region37: #{conv_bn_relu_block.1} parent=35 // pred_check
        %p492 = pneg %p491
      $region38: #{conv_bn_relu_block.1} parent=35 // pred_check_branch
        %494 = sbr.rel (%p492) target = $region40
      $region39: #{conv_bn_relu_block.1} parent=35 // pred_region
        %p495 = scmp.eq.s32.totalorder %s20, 0
        // Predicated region
        $region41: #{conv_bn_relu_block.1} parent=39 // pred_check
          %p496 = pneg %p495
        $region42: #{conv_bn_relu_block.1} parent=39 // pred_check_branch
          %498 = sbr.rel (%p496) target = $region44
        $region43: #{conv_bn_relu_block.1} parent=39 // pred_region
          %499 = vst [vmem:[#allocation2] sm:$0x3] 0.0
        $region44: #{conv_bn_relu_block.1} parent=39 // pred_fallthru
          _
        %v500 = vld [vmem:[#allocation2] sm:$0x1]
        %v501 = vadd.f32 %v333, %v338
        %v502 = vadd.f32 %v501, %v343
        %v503 = vadd.f32 %v502, %v348
        %v504 = vadd.f32 %v503, %v353
        %v505 = vadd.f32 %v504, %v358
        %v506 = vadd.f32 %v505, %v363
        %v507 = vadd.f32 %v506, %v368
        %v508 = vadd.f32 %v507, %v373
        %v509 = vadd.f32 %v508, %v378
        %v510 = vadd.f32 %v509, %v383
        %v511 = vadd.f32 %v510, %v388
        %v512 = vadd.f32 %v511, %v393
        %v513 = vadd.f32 %v512, %v398
        %v514 = vadd.f32 %v513, %v403
        %v515 = vadd.f32 %v514, %v408
        %v516 = vadd.f32 %v515, %v413
        %v517 = vadd.f32 %v516, %v418
        %v518 = vadd.f32 %v517, %v423
        %v519 = vadd.f32 %v518, %v428
        %v520 = vadd.f32 %v519, %v433
        %v521 = vadd.f32 %v520, %v438
        %v522 = vadd.f32 %v521, %v443
        %v523 = vadd.f32 %v522, %v448
        %v524 = vadd.f32 %v523, %v453
        %v525 = vadd.f32 %v524, %v458
        %v526 = vadd.f32 %v525, %v463
        %v527 = vadd.f32 %v526, %v468
        %v528 = vadd.f32 %v527, %v473
        %v529 = vadd.f32 %v528, %v478
        %v530 = vadd.f32 %v529, %v483
        %v531 = vadd.f32 %v530, %v488
        %v532 = vrot.slane %v531, 4
        %v533 = vadd.f32 %v531, %v532
        %v534 = vrot.slane %v533, 2
        %v535 = vadd.f32 %v533, %v534
        %v536 = vrot.slane %v535, 1
        %v537 = vadd.f32 %v535, %v536
        %v538 = vadd.f32 %v500, %v537
        %539 = vst [vmem:[#allocation2] sm:$0x1] %v538
        %v540 = vld [vmem:[#allocation2 + $0x1] sm:$0x1]
        %v541 = vmul.f32 %v333, %v333
        %v542 = vmul.f32 %v338, %v338
        %v543 = vmul.f32 %v343, %v343
        %v544 = vmul.f32 %v348, %v348
        %v545 = vmul.f32 %v353, %v353
        %v546 = vmul.f32 %v358, %v358
        %v547 = vmul.f32 %v363, %v363
        %v548 = vmul.f32 %v368, %v368
        %v549 = vmul.f32 %v373, %v373
        %v550 = vmul.f32 %v378, %v378
        %v551 = vmul.f32 %v383, %v383
        %v552 = vmul.f32 %v388, %v388
        %v553 = vmul.f32 %v393, %v393
        %v554 = vmul.f32 %v398, %v398
        %v555 = vmul.f32 %v403, %v403
        %v556 = vmul.f32 %v408, %v408
        %v557 = vmul.f32 %v413, %v413
        %v558 = vmul.f32 %v418, %v418
        %v559 = vmul.f32 %v423, %v423
        %v560 = vmul.f32 %v428, %v428
        %v561 = vmul.f32 %v433, %v433
        %v562 = vmul.f32 %v438, %v438
        %v563 = vmul.f32 %v443, %v443
        %v564 = vmul.f32 %v448, %v448
        %v565 = vmul.f32 %v453, %v453
        %v566 = vmul.f32 %v458, %v458
        %v567 = vmul.f32 %v463, %v463
        %v568 = vmul.f32 %v468, %v468
        %v569 = vmul.f32 %v473, %v473
        %v570 = vmul.f32 %v478, %v478
        %v571 = vmul.f32 %v483, %v483
        %v572 = vmul.f32 %v488, %v488
        %v573 = vadd.f32 %v541, %v542
        %v574 = vadd.f32 %v573, %v543
        %v575 = vadd.f32 %v574, %v544
        %v576 = vadd.f32 %v575, %v545
        %v577 = vadd.f32 %v576, %v546
        %v578 = vadd.f32 %v577, %v547
        %v579 = vadd.f32 %v578, %v548
        %v580 = vadd.f32 %v579, %v549
        %v581 = vadd.f32 %v580, %v550
        %v582 = vadd.f32 %v581, %v551
        %v583 = vadd.f32 %v582, %v552
        %v584 = vadd.f32 %v583, %v553
        %v585 = vadd.f32 %v584, %v554
        %v586 = vadd.f32 %v585, %v555
        %v587 = vadd.f32 %v586, %v556
        %v588 = vadd.f32 %v587, %v557
        %v589 = vadd.f32 %v588, %v558
        %v590 = vadd.f32 %v589, %v559
        %v591 = vadd.f32 %v590, %v560
        %v592 = vadd.f32 %v591, %v561
        %v593 = vadd.f32 %v592, %v562
        %v594 = vadd.f32 %v593, %v563
        %v595 = vadd.f32 %v594, %v564
        %v596 = vadd.f32 %v595, %v565
        %v597 = vadd.f32 %v596, %v566
        %v598 = vadd.f32 %v597, %v567
        %v599 = vadd.f32 %v598, %v568
        %v600 = vadd.f32 %v599, %v569
        %v601 = vadd.f32 %v600, %v570
        %v602 = vadd.f32 %v601, %v571
        %v603 = vadd.f32 %v602, %v572
        %v604 = vrot.slane %v603, 4
        %v605 = vadd.f32 %v603, %v604
        %v606 = vrot.slane %v605, 2
        %v607 = vadd.f32 %v605, %v606
        %v608 = vrot.slane %v607, 1
        %v609 = vadd.f32 %v607, %v608
        %v610 = vadd.f32 %v540, %v609
        %611 = vst [vmem:[#allocation2 + $0x1] sm:$0x1] %v610
        %p612 = scmp.eq.s32.totalorder %s20, 1
        // Predicated region
        $region45: #{conv_bn_relu_block.1} parent=39 // pred_check
          %p613 = pneg %p612
        $region46: #{conv_bn_relu_block.1} parent=39 // pred_check_branch
          %615 = sbr.rel (%p613) target = $region48
        $region47: #{conv_bn_relu_block.1} parent=39 // pred_region
          %v616 = vld [vmem:[#allocation2] sm:$0x1]
          %v617 = vmul.f32 %v616, 0.001953125
          %v618 = vld [vmem:[#allocation2 + $0x1] sm:$0x1]
          %v619 = vmul.f32 %v618, 0.001953125
          %v620 = vmul.f32 %v617, %v617
          %v621 = vsub.f32 %v619, %v620
          %v622 = vld [vmem:[%s2] sm:$0x1]
          %v623 = vadd.f32 %v621, 1e-05
          %v624 = vrsqrt.pop %v623
          %v625 = vmul.f32 %v622, %v624
          %v626 = vld [vmem:[%s3] sm:$0x1]
          %v627 = vmul.f32 %v617, %v625
          %v628 = vsub.f32 %v626, %v627
          %629 = vst [vmem:[#allocation2] sm:$0x1] %v625
          %630 = vst [vmem:[#allocation2 + $0x1] sm:$0x1] %v628
        $region48: #{conv_bn_relu_block.1} parent=39 // pred_fallthru
          _
      $region40: #{conv_bn_relu_block.1} parent=35 // pred_fallthru
        _
      %p631 = scmp.eq.s32.totalorder %s19, 1
      // Predicated region
      $region49: #{conv_bn_relu_block.1} parent=35 // pred_check
        %p632 = pneg %p631
      $region50: #{conv_bn_relu_block.1} parent=35 // pred_check_branch
        %634 = sbr.rel (%p632) target = $region52
      $region51: #{conv_bn_relu_block.1} parent=35 // pred_region
        %v635 = vld [vmem:[#allocation2] sm:$0x1]
        %v636 = vld [vmem:[#allocation2 + $0x1] sm:$0x1]
        %v637 = vlaneseq
        %v638 = vshrl.u32 %v637, 7
        %v639 = vsub.s32 0, %v638
        %v640 = vrot.slane %v635, %v639
        %v641 = vmul.f32 %v333, %v640
        %v642 = vmul.f32 %v338, %v640
        %v643 = vmul.f32 %v343, %v640
        %v644 = vmul.f32 %v348, %v640
        %v645 = vmul.f32 %v353, %v640
        %v646 = vmul.f32 %v358, %v640
        %v647 = vmul.f32 %v363, %v640
        %v648 = vmul.f32 %v368, %v640
        %v649 = vmul.f32 %v373, %v640
        %v650 = vmul.f32 %v378, %v640
        %v651 = vmul.f32 %v383, %v640
        %v652 = vmul.f32 %v388, %v640
        %v653 = vmul.f32 %v393, %v640
        %v654 = vmul.f32 %v398, %v640
        %v655 = vmul.f32 %v403, %v640
        %v656 = vmul.f32 %v408, %v640
        %v657 = vmul.f32 %v413, %v640
        %v658 = vmul.f32 %v418, %v640
        %v659 = vmul.f32 %v423, %v640
        %v660 = vmul.f32 %v428, %v640
        %v661 = vmul.f32 %v433, %v640
        %v662 = vmul.f32 %v438, %v640
        %v663 = vmul.f32 %v443, %v640
        %v664 = vmul.f32 %v448, %v640
        %v665 = vmul.f32 %v453, %v640
        %v666 = vmul.f32 %v458, %v640
        %v667 = vmul.f32 %v463, %v640
        %v668 = vmul.f32 %v468, %v640
        %v669 = vmul.f32 %v473, %v640
        %v670 = vmul.f32 %v478, %v640
        %v671 = vmul.f32 %v483, %v640
        %v672 = vmul.f32 %v488, %v640
        %v673 = vlaneseq
        %v674 = vshrl.u32 %v673, 7
        %v675 = vsub.s32 0, %v674
        %v676 = vrot.slane %v636, %v675
        %v677 = vadd.f32 %v641, %v676
        %v678 = vadd.f32 %v642, %v676
        %v679 = vadd.f32 %v643, %v676
        %v680 = vadd.f32 %v644, %v676
        %v681 = vadd.f32 %v645, %v676
        %v682 = vadd.f32 %v646, %v676
        %v683 = vadd.f32 %v647, %v676
        %v684 = vadd.f32 %v648, %v676
        %v685 = vadd.f32 %v649, %v676
        %v686 = vadd.f32 %v650, %v676
        %v687 = vadd.f32 %v651, %v676
        %v688 = vadd.f32 %v652, %v676
        %v689 = vadd.f32 %v653, %v676
        %v690 = vadd.f32 %v654, %v676
        %v691 = vadd.f32 %v655, %v676
        %v692 = vadd.f32 %v656, %v676
        %v693 = vadd.f32 %v657, %v676
        %v694 = vadd.f32 %v658, %v676
        %v695 = vadd.f32 %v659, %v676
        %v696 = vadd.f32 %v660, %v676
        %v697 = vadd.f32 %v661, %v676
        %v698 = vadd.f32 %v662, %v676
        %v699 = vadd.f32 %v663, %v676
        %v700 = vadd.f32 %v664, %v676
        %v701 = vadd.f32 %v665, %v676
        %v702 = vadd.f32 %v666, %v676
        %v703 = vadd.f32 %v667, %v676
        %v704 = vadd.f32 %v668, %v676
        %v705 = vadd.f32 %v669, %v676
        %v706 = vadd.f32 %v670, %v676
        %v707 = vadd.f32 %v671, %v676
        %v708 = vadd.f32 %v672, %v676
        %v709 = vmax.f32 %v677, 0.0
        %v710 = vmax.f32 %v678, 0.0
        %v711 = vmax.f32 %v679, 0.0
        %v712 = vmax.f32 %v680, 0.0
        %v713 = vmax.f32 %v681, 0.0
        %v714 = vmax.f32 %v682, 0.0
        %v715 = vmax.f32 %v683, 0.0
        %v716 = vmax.f32 %v684, 0.0
        %v717 = vmax.f32 %v685, 0.0
        %v718 = vmax.f32 %v686, 0.0
        %v719 = vmax.f32 %v687, 0.0
        %v720 = vmax.f32 %v688, 0.0
        %v721 = vmax.f32 %v689, 0.0
        %v722 = vmax.f32 %v690, 0.0
        %v723 = vmax.f32 %v691, 0.0
        %v724 = vmax.f32 %v692, 0.0
        %v725 = vmax.f32 %v693, 0.0
        %v726 = vmax.f32 %v694, 0.0
        %v727 = vmax.f32 %v695, 0.0
        %v728 = vmax.f32 %v696, 0.0
        %v729 = vmax.f32 %v697, 0.0
        %v730 = vmax.f32 %v698, 0.0
        %v731 = vmax.f32 %v699, 0.0
        %v732 = vmax.f32 %v700, 0.0
        %v733 = vmax.f32 %v701, 0.0
        %v734 = vmax.f32 %v702, 0.0
        %v735 = vmax.f32 %v703, 0.0
        %v736 = vmax.f32 %v704, 0.0
        %v737 = vmax.f32 %v705, 0.0
        %v738 = vmax.f32 %v706, 0.0
        %v739 = vmax.f32 %v707, 0.0
        %v740 = vmax.f32 %v708, 0.0
        %741 = vst [vmem:[%s215] sm:$0xff] %v709
        %742 = vst [vmem:[%s215 + $0x8] sm:$0xff] %v710
        %743 = vst [vmem:[%s215 + $0x10] sm:$0xff] %v711
        %744 = vst [vmem:[%s215 + $0x18] sm:$0xff] %v712
        %745 = vst [vmem:[%s215 + $0x20] sm:$0xff] %v713
        %746 = vst [vmem:[%s215 + $0x28] sm:$0xff] %v714
        %747 = vst [vmem:[%s215 + $0x30] sm:$0xff] %v715
        %748 = vst [vmem:[%s215 + $0x38] sm:$0xff] %v716
        %749 = vst [vmem:[%s215 + $0x40] sm:$0xff] %v717
        %750 = vst [vmem:[%s215 + $0x48] sm:$0xff] %v718
        %751 = vst [vmem:[%s215 + $0x50] sm:$0xff] %v719
        %752 = vst [vmem:[%s215 + $0x58] sm:$0xff] %v720
        %753 = vst [vmem:[%s215 + $0x60] sm:$0xff] %v721
        %754 = vst [vmem:[%s215 + $0x68] sm:$0xff] %v722
        %755 = vst [vmem:[%s215 + $0x70] sm:$0xff] %v723
        %756 = vst [vmem:[%s215 + $0x78] sm:$0xff] %v724
        %757 = vst [vmem:[%s215 + $0x80] sm:$0xff] %v725
        %758 = vst [vmem:[%s215 + $0x88] sm:$0xff] %v726
        %759 = vst [vmem:[%s215 + $0x90] sm:$0xff] %v727
        %760 = vst [vmem:[%s215 + $0x98] sm:$0xff] %v728
        %761 = vst [vmem:[%s215 + $0xa0] sm:$0xff] %v729
        %762 = vst [vmem:[%s215 + $0xa8] sm:$0xff] %v730
        %763 = vst [vmem:[%s215 + $0xb0] sm:$0xff] %v731
        %764 = vst [vmem:[%s215 + $0xb8] sm:$0xff] %v732
        %765 = vst [vmem:[%s215 + $0xc0] sm:$0xff] %v733
        %766 = vst [vmem:[%s215 + $0xc8] sm:$0xff] %v734
        %767 = vst [vmem:[%s215 + $0xd0] sm:$0xff] %v735
        %768 = vst [vmem:[%s215 + $0xd8] sm:$0xff] %v736
        %769 = vst [vmem:[%s215 + $0xe0] sm:$0xff] %v737
        %770 = vst [vmem:[%s215 + $0xe8] sm:$0xff] %v738
        %771 = vst [vmem:[%s215 + $0xf0] sm:$0xff] %v739
        %772 = vst [vmem:[%s215 + $0xf8] sm:$0xff] %v740
      $region52: #{conv_bn_relu_block.1} parent=35 // pred_fallthru
        _
      %s773 = smul.u32 %s19, %s20
      %s774 = smul.u32 32, %s773
      %p775 = scmp.lt.s32.totalorder %s774, 63
      %s776 = scalar_select %p775, %s774, 63
      %s777 = smul.addr %s776, 8
      %s778 = scalar_lea.vmem %s4, %s777
      // Predicated region
      $region53: #{conv_bn_relu_block.1} parent=35 // pred_check
        %p779 = pneg %p136
      $region54: #{conv_bn_relu_block.1} parent=35 // pred_check_branch
        %781 = sbr.rel (%p779) target = $region56
      $region55: #{conv_bn_relu_block.1} parent=35 // pred_region
        %s782 = smul.u32 %s19, %s20
        %s783 = smul.u32 32, %s782
      $region56: #{conv_bn_relu_block.1} parent=35 // pred_fallthru
        _
    $region36: #{conv_bn_relu_block.1} parent=5 // pred_fallthru
      _
    %p784 = scmp.le.s32.totalorder 2, %s10
    // Predicated region
    $region57: #{conv_bn_relu_block.1} parent=5 // pred_check
      %p785 = pneg %p784
    $region58: #{conv_bn_relu_block.1} parent=5 // pred_check_branch
      %787 = sbr.rel (%p785) target = $region60
    $region59: #{conv_bn_relu_block.1} parent=5 // pred_region
      %s788 = ssub.s32 %s10, 2
      // Predicated region
      $region61: #{conv_bn_relu_block.1} parent=59 // pred_check
        %p789 = pneg %p142
      $region62: #{conv_bn_relu_block.1} parent=59 // pred_check_branch
        %791 = sbr.rel (%p789) target = $region64
      $region63: #{conv_bn_relu_block.1} parent=59 // pred_region
        %s792 = smul.u32 %s21, %s22
        %s793 = smul.u32 32, %s792
        %p794 = scmp.lt.s32.totalorder %s793, 63
        %s795 = scalar_select %p794, %s793, 63
        %s796 = smul.addr %s795, 8
        %s797 = scalar_lea.vmem %s4, %s796
      $region64: #{conv_bn_relu_block.1} parent=59 // pred_fallthru
        _
    $region60: #{conv_bn_relu_block.1} parent=5 // pred_fallthru
      _
  $region6: #{conv_bn_relu_block.1} parent=0 // loop_footer
    %s14 = sadd.s32 1, %s10
  $region7: #{conv_bn_relu_block.1} parent=0 // loop_footer_branch
    %9 = sbr.rel target = $region3
  $region8: #{conv_bn_relu_block.1} parent=0 // loop_exit
    _

</llo_original>
